<compile_context>
chip_gen: v7x
topology: tpu7x:2x2x1
jax: 0.10.0
libtpu: 0.0.40
codegen_flags: <defaults>
</compile_context>

<pallas_src>
import math

import jax
import jax.numpy as jnp
from jax.experimental import pallas as pl
from jax.experimental.pallas import tpu as pltpu


def _round_up(x, m):
    return ((x + m - 1) // m) * m


def _make_fused_kernel(*, n_k, max_k, c_in_p, TL, L, NL, tiled_out):
    halo = max_k - 1

    def kernel(x_ref, w_ref, b_ref, o_ref, rhs_ref):
        # x_ref : (1, c_in_p, L + max_k - 1)   shared padded input (resident per batch item)
        # w_ref : (1, C_out_p, max_k*c_in_p)   folded tap-major weight of this branch
        # b_ref : (1, C_out_p, 1)              bias (f32)
        # o_ref : (1, C_out_p, TL)             [tiled path]
        #         (1, C_out_p, n_k*L)          [small-L resident path]
        # rhs_ref: (max_k*c_in_p, TL)          VMEM scratch for the unfolded RHS
        if NL > 1:
            start = pl.multiple_of(pl.program_id(2) * TL, TL)
        else:
            start = 0  # static

        # One (lane-aligned-start) window load per tile; the k shifted views are
        # static slices of the loaded value -> shifts hoisted, no per-tap realign.
        window = x_ref[0, :, pl.ds(start, TL + halo)]          # (c_in_p, TL+halo)
        for t in range(max_k):
            rhs_ref[t * c_in_p:(t + 1) * c_in_p, :] = window[:, t:t + TL]

        # Single folded MXU matmul: contraction depth = max_k * c_in_p.
        acc = jnp.dot(w_ref[0], rhs_ref[...],
                      preferred_element_type=jnp.float32)      # (C_out_p, TL)
        acc = acc + b_ref[0].astype(jnp.float32)

        # GeLU (tanh approximation), identical to the PyTorch GeLU module.
        y = 0.5 * acc * (1.0 + jnp.tanh(acc * 0.7978845608 *
                                        (1.0 + 0.044715 * acc * acc)))
        y = y.astype(o_ref.dtype)

        if tiled_out:
            o_ref[0] = y                                       # lane-dense full-block store
        else:
            # Resident concatenated row: write this branch's static slice.
            br = pl.program_id(1)
            for bb in range(n_k):
                @pl.when(br == bb)
                def _write(bb=bb):
                    o_ref[0, :, bb * L:(bb + 1) * L] = y

    return kernel


def conv1d_module_forward(x, params, *, compute_dtype=None):
    """Equivalent of Conv1d.forward: per-branch 'same' conv1d + bias + GeLU,
    branch outputs concatenated along dim=-1. Emitted from one fused pallas_call.

    x:       (N, C_in, L) float32
    params:  list of (w, b) with w: (C_out_per, C_in, k) effective weight
             (weight_norm already applied), b: (C_out_per,)
    compute_dtype: optional (e.g. jnp.bfloat16) for the matmul inputs;
             accumulation, bias and GeLU stay in f32.
    """
    N, C_in, L = x.shape
    n_k = len(params)
    c_out = int(params[0][0].shape[0])
    ks = [int(w.shape[-1]) for (w, _) in params]
    max_k = max(ks)
    pad_max = (max_k - 1) // 2

    # ---- length tiling -----------------------------------------------------
    if L % 128 == 0:
        TL = 128
        for cand in (512, 384, 256):
            if L % cand == 0:
                TL = cand
                break
        tiled_out = True
    else:
        TL = L                 # small / odd L: single tile, resident output row
        tiled_out = False
    NL = L // TL

    # ---- pack operands once (shared across all branches) --------------------
    c_in_p = _round_up(C_in, 8)       # sublane-aligned contraction channels
    c_out_p = _round_up(c_out, 8)

    x_c = x if compute_dtype is None else x.astype(compute_dtype)
    # single shared pad: channels -> c_in_p, length halo pad_max on both sides
    x_pad = jnp.pad(x_c, ((0, 0), (0, c_in_p - C_in), (pad_max, pad_max)))
    Lp = L + 2 * pad_max              # == L + max_k - 1

    # Fold every branch's taps into one (C_out_p, max_k*c_in_p) matrix,
    # zero-padded and centered so one shared halo serves all kernel sizes.
    w_blocks, b_blocks = [], []
    for (w, b) in params:
        k = int(w.shape[-1])
        off = pad_max - (k - 1) // 2
        wb = jnp.zeros((c_out_p, max_k, c_in_p), w.dtype)
        wb = wb.at[:c_out, off:off + k, :C_in].set(jnp.transpose(w, (0, 2, 1)))
        w_blocks.append(wb.reshape(c_out_p, max_k * c_in_p))
        b_blocks.append(jnp.pad(b, (0, c_out_p - c_out)).reshape(c_out_p, 1))
    w_all = jnp.stack(w_blocks)                       # (n_k, C_out_p, max_k*c_in_p)
    b_all = jnp.stack(b_blocks).astype(jnp.float32)   # (n_k, C_out_p, 1)
    if compute_dtype is not None:
        w_all = w_all.astype(compute_dtype)

    kernel = _make_fused_kernel(n_k=n_k, max_k=max_k, c_in_p=c_in_p,
                                TL=TL, L=L, NL=NL, tiled_out=tiled_out)

    in_specs = [
        # x: block index depends only on the batch axis -> fetched once per
        # batch item and kept resident across branches / L tiles.
        pl.BlockSpec((1, c_in_p, Lp), lambda n, b, lt: (n, 0, 0)),
        # folded weight / bias: one (small) block per branch.
        pl.BlockSpec((1, c_out_p, max_k * c_in_p), lambda n, b, lt: (b, 0, 0)),
        pl.BlockSpec((1, c_out_p, 1), lambda n, b, lt: (b, 0, 0)),
    ]
    if tiled_out:
        # Direct write into the concatenated layout with lane-dense TL blocks.
        out_spec = pl.BlockSpec((1, c_out_p, TL),
                                lambda n, b, lt: (n, 0, b * NL + lt))
        dims = ("parallel", "parallel", "parallel")
    else:
        # Small-L fallback: whole concatenated row stays resident; each branch
        # writes its slice; written back to HBM once per batch item.
        out_spec = pl.BlockSpec((1, c_out_p, n_k * L),
                                lambda n, b, lt: (n, 0, 0))
        dims = ("parallel", "arbitrary", "arbitrary")

    rhs_dtype = x_pad.dtype
    out = pl.pallas_call(
        kernel,
        out_shape=jax.ShapeDtypeStruct((N, c_out_p, n_k * L), x.dtype),
        grid=(N, n_k, NL),
        in_specs=in_specs,
        out_specs=out_spec,
        scratch_shapes=[pltpu.VMEM((max_k * c_in_p, TL), rhs_dtype)],
        compiler_params=pltpu.CompilerParams(
            dimension_semantics=dims,
            vmem_limit_bytes=48 * 1024 * 1024,   # fits v7x (64 MiB) and v5e/v6e
        ),
    )(x_pad, w_all, b_all)

    if c_out_p != c_out:
        out = out[:, :c_out, :]
    return out


def init_conv1d_params(key, in_channels, out_channels, kernel_sizes):
    """Deterministic init mirroring the PyTorch module's __init__.

    weight ~ Normal(0, sqrt(2 / (in_channels * k))), bias = 0.  weight_norm is
    the identity at init, so the effective weight equals the initialized one.
    """
    assert all(k % 2 == 1 for k in kernel_sizes), "only support odd kernel sizes"
    assert out_channels % len(kernel_sizes) == 0, "out channels must be dividable by kernels"
    c_out_per = out_channels // len(kernel_sizes)
    params = []
    for i, k in enumerate(kernel_sizes):
        wkey = jax.random.fold_in(key, i)
        std = math.sqrt(2.0 / (in_channels * k))
        w = jax.random.normal(wkey, (c_out_per, in_channels, k), jnp.float32) * std
        b = jnp.zeros((c_out_per,), jnp.float32)
        params.append((w, b))
    return params


def _reference_forward(x, params):
    """Pure-JAX reference (lax conv) for correctness checks."""
    outs = []
    for (w, b) in params:
        k = w.shape[-1]
        pad = (k - 1) // 2
        y = jax.lax.conv_general_dilated(
            x, w, window_strides=(1,), padding=[(pad, pad)],
            dimension_numbers=("NCH", "OIH", "NCH"),
        ) + b[None, :, None]
        y = 0.5 * y * (1.0 + jnp.tanh(y * 0.7978845608 * (1.0 + 0.044715 * y * y)))
        outs.append(y)
    return jnp.concatenate(outs, axis=-1)


if __name__ == "__main__":
    key = jax.random.PRNGKey(0)
    xkey, pkey, xkey2, pkey2 = jax.random.split(key, 4)

    # --- small case (exercises the small-L resident-output path) -------------
    N, C_in, L = 2, 4, 16
    C_out_total, kernel_sizes = 8, (3, 5)
    x = jax.random.normal(xkey, (N, C_in, L), jnp.float32)
    params = init_conv1d_params(pkey, C_in, C_out_total, kernel_sizes)

    out = jax.block_until_ready(conv1d_module_forward(x, params))
    expected = (N, C_out_total // len(kernel_sizes), L * len(kernel_sizes))
    assert out.shape == expected, (out.shape, expected)
    ref = jax.block_until_ready(_reference_forward(x, params))
    assert jnp.allclose(out, ref, atol=1e-4, rtol=1e-4), "small-case mismatch"

    # --- larger case (exercises the tiled, lane-dense path: TL=512, 2 tiles) --
    N2, C_in2, L2 = 1, 8, 1024
    C_out_total2, kernel_sizes2 = 32, (3, 5)
    x2 = jax.random.normal(xkey2, (N2, C_in2, L2), jnp.float32)
    params2 = init_conv1d_params(pkey2, C_in2, C_out_total2, kernel_sizes2)

    out2 = jax.block_until_ready(conv1d_module_forward(x2, params2))
    assert out2.shape == (N2, C_out_total2 // 2, L2 * 2)
    ref2 = jax.block_until_ready(_reference_forward(x2, params2))
    assert jnp.allclose(out2, ref2, atol=1e-4, rtol=1e-4), "tiled-case mismatch"

    # --- optional bf16 compute path (halved input traffic, f32 accumulation) --
    out_bf16 = jax.block_until_ready(
        conv1d_module_forward(x, params, compute_dtype=jnp.bfloat16))
    assert out_bf16.shape == expected
    assert jnp.allclose(out_bf16, ref, atol=1e-1, rtol=1e-1), "bf16 mismatch"

    print("KERNEL_OK")
</pallas_src>

<mosaic_0001>
module attributes {stable_mosaic.version = 11 : i64} {
  func.func @kernel(%arg0: i32, %arg1: i32, %arg2: i32, %arg3: memref<1x8x20xf32, #tpu.memory_space<vmem>>, %arg4: memref<1x8x40xf32, #tpu.memory_space<vmem>>, %arg5: memref<1x8x1xf32, #tpu.memory_space<vmem>>, %arg6: memref<1x8x32xf32, #tpu.memory_space<vmem>>, %arg7: memref<40x16xf32, #tpu.memory_space<vmem>>) attributes {dimension_semantics = [#tpu.dimension_semantics<parallel>, #tpu.dimension_semantics<arbitrary>, #tpu.dimension_semantics<arbitrary>], iteration_bounds = array<i64: 2, 2, 1>, scalar_prefetch = 0 : i64, scratch_operands = 1 : i64, tpu.core_type = #tpu.core_type<tc>, window_params = [{transform_indices = @transform_0, window_bounds = array<i64: 1, 8, 20>}, {transform_indices = @transform_1, window_bounds = array<i64: 1, 8, 40>}, {transform_indices = @transform_2, window_bounds = array<i64: 1, 8, 1>}, {transform_indices = @transform_3, window_bounds = array<i64: 1, 8, 32>}]} {
    %c0 = arith.constant 0 : index
    %c0_0 = arith.constant 0 : index
    %c0_1 = arith.constant 0 : index
    %0 = vector.load %arg3[%c0, %c0_0, %c0_1] : memref<1x8x20xf32, #tpu.memory_space<vmem>>, vector<1x8x20xf32>
    %1 = vector.shape_cast %0 : vector<1x8x20xf32> to vector<8x20xf32>
    %2 = vector.extract_strided_slice %1 {offsets = [0, 0], sizes = [8, 16], strides = [1, 1]} : vector<8x20xf32> to vector<8x16xf32>
    %c0_2 = arith.constant 0 : index
    %c0_3 = arith.constant 0 : index
    %3 = vector.load %arg7[%c0_2, %c0_3] : memref<40x16xf32, #tpu.memory_space<vmem>>, vector<8x16xf32>
    tpu.vector_store %arg7[%c0_2, %c0_3], %2 {strides = array<i32>} : memref<40x16xf32, #tpu.memory_space<vmem>>, vector<8x16xf32>,
    %4 = vector.extract_strided_slice %1 {offsets = [0, 1], sizes = [8, 16], strides = [1, 1]} : vector<8x20xf32> to vector<8x16xf32>
    %c8 = arith.constant 8 : index
    %c0_4 = arith.constant 0 : index
    %5 = vector.load %arg7[%c8, %c0_4] : memref<40x16xf32, #tpu.memory_space<vmem>>, vector<8x16xf32>
    tpu.vector_store %arg7[%c8, %c0_4], %4 {strides = array<i32>} : memref<40x16xf32, #tpu.memory_space<vmem>>, vector<8x16xf32>,
    %6 = vector.extract_strided_slice %1 {offsets = [0, 2], sizes = [8, 16], strides = [1, 1]} : vector<8x20xf32> to vector<8x16xf32>
    %c16 = arith.constant 16 : index
    %c0_5 = arith.constant 0 : index
    %7 = vector.load %arg7[%c16, %c0_5] : memref<40x16xf32, #tpu.memory_space<vmem>>, vector<8x16xf32>
    tpu.vector_store %arg7[%c16, %c0_5], %6 {strides = array<i32>} : memref<40x16xf32, #tpu.memory_space<vmem>>, vector<8x16xf32>,
    %8 = vector.extract_strided_slice %1 {offsets = [0, 3], sizes = [8, 16], strides = [1, 1]} : vector<8x20xf32> to vector<8x16xf32>
    %c24 = arith.constant 24 : index
    %c0_6 = arith.constant 0 : index
    %9 = vector.load %arg7[%c24, %c0_6] : memref<40x16xf32, #tpu.memory_space<vmem>>, vector<8x16xf32>
    tpu.vector_store %arg7[%c24, %c0_6], %8 {strides = array<i32>} : memref<40x16xf32, #tpu.memory_space<vmem>>, vector<8x16xf32>,
    %10 = vector.extract_strided_slice %1 {offsets = [0, 4], sizes = [8, 16], strides = [1, 1]} : vector<8x20xf32> to vector<8x16xf32>
    %c32 = arith.constant 32 : index
    %c0_7 = arith.constant 0 : index
    %11 = vector.load %arg7[%c32, %c0_7] : memref<40x16xf32, #tpu.memory_space<vmem>>, vector<8x16xf32>
    tpu.vector_store %arg7[%c32, %c0_7], %10 {strides = array<i32>} : memref<40x16xf32, #tpu.memory_space<vmem>>, vector<8x16xf32>,
    %c0_8 = arith.constant 0 : index
    %c0_9 = arith.constant 0 : index
    %c0_10 = arith.constant 0 : index
    %12 = vector.load %arg4[%c0_8, %c0_9, %c0_10] : memref<1x8x40xf32, #tpu.memory_space<vmem>>, vector<1x8x40xf32>
    %13 = vector.shape_cast %12 : vector<1x8x40xf32> to vector<8x40xf32>
    %c0_11 = arith.constant 0 : index
    %c0_12 = arith.constant 0 : index
    %14 = vector.load %arg7[%c0_11, %c0_12] : memref<40x16xf32, #tpu.memory_space<vmem>>, vector<40x16xf32>
    %cst = arith.constant dense<0.000000e+00> : vector<8x16xf32>
    %15 = tpu.matmul %13, %14, %cst {dimension_numbers = #tpu.dot_dimension_numbers<[1], [0], [0], [1], [0, 0, 1, 1], [], []>} : vector<8x40xf32>, vector<40x16xf32>, vector<8x16xf32> -> vector<8x16xf32>
    %c0_13 = arith.constant 0 : index
    %c0_14 = arith.constant 0 : index
    %c0_15 = arith.constant 0 : index
    %16 = vector.load %arg5[%c0_13, %c0_14, %c0_15] : memref<1x8x1xf32, #tpu.memory_space<vmem>>, vector<1x8x1xf32>
    %17 = vector.shape_cast %16 : vector<1x8x1xf32> to vector<8x1xf32>
    %18 = vector.broadcast %17 : vector<8x1xf32> to vector<8x16xf32>
    %19 = arith.addf %15, %18 : vector<8x16xf32>
    %cst_16 = arith.constant 5.000000e-01 : f32
    %20 = vector.broadcast %cst_16 : f32 to vector<8x16xf32>
    %21 = arith.mulf %20, %19 : vector<8x16xf32>
    %cst_17 = arith.constant 0.797884583 : f32
    %22 = vector.broadcast %cst_17 : f32 to vector<8x16xf32>
    %23 = arith.mulf %19, %22 : vector<8x16xf32>
    %cst_18 = arith.constant 4.471500e-02 : f32
    %24 = vector.broadcast %cst_18 : f32 to vector<8x16xf32>
    %25 = arith.mulf %24, %19 : vector<8x16xf32>
    %26 = arith.mulf %25, %19 : vector<8x16xf32>
    %cst_19 = arith.constant 1.000000e+00 : f32
    %27 = vector.broadcast %cst_19 : f32 to vector<8x16xf32>
    %28 = arith.addf %27, %26 : vector<8x16xf32>
    %29 = arith.mulf %23, %28 : vector<8x16xf32>
    %30 = math.tanh %29 : vector<8x16xf32>
    %cst_20 = arith.constant 1.000000e+00 : f32
    %31 = vector.broadcast %cst_20 : f32 to vector<8x16xf32>
    %32 = arith.addf %31, %30 : vector<8x16xf32>
    %33 = arith.mulf %21, %32 : vector<8x16xf32>
    %c0_i32 = arith.constant 0 : i32
    %34 = arith.cmpi eq, %arg1, %c0_i32 : i32
    %35 = arith.extui %34 : i1 to i32
    %c0_i32_21 = arith.constant 0 : i32
    %36 = arith.cmpi ne, %35, %c0_i32_21 : i32
    scf.if %36 {
      %c0_23 = arith.constant 0 : index
      %c0_24 = arith.constant 0 : index
      %c0_25 = arith.constant 0 : index
      %40 = vector.load %arg6[%c0_23, %c0_24, %c0_25] : memref<1x8x32xf32, #tpu.memory_space<vmem>>, vector<1x8x16xf32>
      %41 = vector.shape_cast %40 : vector<1x8x16xf32> to vector<8x16xf32>
      %42 = vector.shape_cast %33 : vector<8x16xf32> to vector<1x8x16xf32>
      tpu.vector_store %arg6[%c0_23, %c0_24, %c0_25], %42 {strides = array<i32>} : memref<1x8x32xf32, #tpu.memory_space<vmem>>, vector<1x8x16xf32>,
    } else {
    }
    %c1_i32 = arith.constant 1 : i32
    %37 = arith.cmpi eq, %arg1, %c1_i32 : i32
    %38 = arith.extui %37 : i1 to i32
    %c0_i32_22 = arith.constant 0 : i32
    %39 = arith.cmpi ne, %38, %c0_i32_22 : i32
    scf.if %39 {
      %c0_23 = arith.constant 0 : index
      %c0_24 = arith.constant 0 : index
      %c16_25 = arith.constant 16 : index
      %40 = vector.load %arg6[%c0_23, %c0_24, %c16_25] : memref<1x8x32xf32, #tpu.memory_space<vmem>>, vector<1x8x16xf32>
      %41 = vector.shape_cast %40 : vector<1x8x16xf32> to vector<8x16xf32>
      %42 = vector.shape_cast %33 : vector<8x16xf32> to vector<1x8x16xf32>
      tpu.vector_store %arg6[%c0_23, %c0_24, %c16_25], %42 {strides = array<i32>} : memref<1x8x32xf32, #tpu.memory_space<vmem>>, vector<1x8x16xf32>,
    } else {
    }
    return
  }
  func.func @transform_0(%arg0: i32, %arg1: i32, %arg2: i32) -> (i32, i32, i32) {
    %c0_i32 = arith.constant 0 : i32
    %c0_i32_0 = arith.constant 0 : i32
    %c0_i32_1 = arith.constant 0 : i32
    return %arg0, %c0_i32, %c0_i32_0 : i32, i32, i32
  }
  func.func @transform_1(%arg0: i32, %arg1: i32, %arg2: i32) -> (i32, i32, i32) {
    %c0_i32 = arith.constant 0 : i32
    %c0_i32_0 = arith.constant 0 : i32
    %c0_i32_1 = arith.constant 0 : i32
    return %arg1, %c0_i32, %c0_i32_0 : i32, i32, i32
  }
  func.func @transform_2(%arg0: i32, %arg1: i32, %arg2: i32) -> (i32, i32, i32) {
    %c0_i32 = arith.constant 0 : i32
    %c0_i32_0 = arith.constant 0 : i32
    %c0_i32_1 = arith.constant 0 : i32
    return %arg1, %c0_i32, %c0_i32_0 : i32, i32, i32
  }
  func.func @transform_3(%arg0: i32, %arg1: i32, %arg2: i32) -> (i32, i32, i32) {
    %c0_i32 = arith.constant 0 : i32
    %c0_i32_0 = arith.constant 0 : i32
    %c0_i32_1 = arith.constant 0 : i32
    return %arg0, %c0_i32, %c0_i32_0 : i32, i32, i32
  }
}

</mosaic_0001>

<llo_original>
// kernel: tpu_custom_call.1
$region0: #{tpu_custom_call.1}
  #allocation0 [shape = 'u32[]', space=smem, size = 0x4, offset = 0x4, fixed_abs, tag = 'smem constant byte address 0x4 - core index']
  #allocation1 [shape = 'u32[144,128]{1,0:T(1,128)}', space=vmem, size = 0x12000, scoped, tag = 'internal scratch']
  #allocation2 [shape = 'f32[40,16]{1,0:T(8,128)}', space=vmem, size = 0x5000, scoped, tag = 'scratch operand']
  %s0 = inlined_call_operand.vmem [shape: f32[2,8,20], index: 0, kind: input, shape index: {}]
  %s1 = inlined_call_operand.hbm [shape: f32[2,8,40], index: 1, kind: input, shape index: {}]
  %s2 = inlined_call_operand.vmem [shape: f32[2,8,1], index: 2, kind: input, shape index: {}]
  %s3 = inlined_call_operand.hbm [shape: f32[2,8,32], index: 3, kind: output, shape index: {}]
  %s4 = sld [smem:[#allocation0]]
  $region57: #{tpu_custom_call.1} parent=0
    _
  %s6 = ssub.s32 1, %s4
  %s7 = scalar_select 0, %s6, %s4
  $region1: #{tpu_custom_call.1} parent=0
    #allocation3 [shape = 'u8[8192]{0}', space=vmem, size = 0x2000, scoped, tag = 'input window, operand 1']
    #allocation4 [shape = 's32[2]{0}', space=sflag, size = 0x8, scoped, tag = 'scoped memory for tpu_custom_call.1']
    #allocation5 [shape = 's32[2]{0}', space=sflag, size = 0x8, scoped, tag = 'scoped memory for tpu_custom_call.1']
    #allocation6 [shape = 'u8[8192]{0}', space=vmem, size = 0x2000, scoped, tag = 'output window, operand 0']
    %8 = vsyncpa [#allocation4], 0
    %s9 = scalar_lea.sflag [#allocation4], 1
    %10 = vsyncpa %s9, 0
    %11 = vsyncpa [#allocation5], 0
    %s12 = scalar_lea.sflag [#allocation5], 1
    %13 = vsyncpa %s12, 0
    loop: start=0, step=1, limit=6
    $region2: #{tpu_custom_call.1} parent=1 // loop_pre_header
      _
    $region3: #{tpu_custom_call.1} parent=1 // loop_header
      %s15 = sphi 0, %s19
      %p16 = scmp.ge.s32.totalorder %s15, 6
      %s22 = sphi 0, %s41
      %s23 = sphi 0, %s37
      %s24 = sphi 0, %s33
      %s25 = sphi 0, %s22
      %s26 = sphi 0, %s23
      %s27 = sphi 0, %s24
      %s28 = sphi 0, %s25
      %s29 = sphi 0, %s26
      %s30 = sphi 0, %s27
      %s44 = sphi 0, %s46
      %s47 = sphi 0, %s44
      %s48 = sphi 0, %s47
      %s64 = sphi 0, %s48
      %s70 = sphi 0, %s72
      %s73 = sphi 0, %s70
      %s74 = sphi 0, %s73
      %s90 = sphi 0, %s74
      %s96 = sphi 0, %s98
      %s99 = sphi 0, %s96
      %s100 = sphi 0, %s99
      %s116 = sphi 0, %s100
      %s122 = sphi 0, %s124
      %s125 = sphi 0, %s122
      %s126 = sphi 0, %s125
      %s142 = sphi 0, %s126
    $region4: #{tpu_custom_call.1} parent=1 // loop_header_branch
      %18 = sbr.rel (%p16) target = $region8
    $region5: #{tpu_custom_call.1} parent=1 // loop_body
      %s20 = ssub.s32 %s15, 1
      %s21 = ssub.s32 %s15, 2
      %s31 = sadd.s32 1, %s24
      %p32 = scmp.ge.s32.totalorder %s31, 1
      %s33 = scalar_select %p32, 0, %s31
      %s34 = sadd.s32 1, %s23
      %s35 = scalar_select %p32, %s34, %s23
      %p36 = scmp.ge.s32.totalorder %s35, 2
      %s37 = scalar_select %p36, 0, %s35
      %s38 = sadd.s32 1, %s22
      %s39 = scalar_select %p36, %s38, %s22
      %p40 = scmp.ge.s32.totalorder %s39, 2
      %s41 = scalar_select %p40, 0, %s39
      %s42 = ssub.s32 %s22, %s41
      %p43 = scmp.eq.s32.totalorder %s42, 0
      %s45 = sadd.s32 %s44, 1
      %s46 = scalar_select %p43, %s44, %s45
      %p49 = pneg %p43
      %p50 = scmp.eq.s32.totalorder %s15, 3
      %p51 = por %p49, %p50
      %p52 = scmp.ne.s32.totalorder %s44, %s47
      %p53 = scmp.eq.s32.totalorder %s15, 0
      %p54 = por %p52, %p53
      %p55 = scmp.ne.s32.totalorder %s44, %s47
      %p56 = scmp.eq.s32.totalorder %s20, 3
      %p57 = por %p55, %p56
      %p58 = scmp.ne.s32.totalorder %s47, %s48
      %p59 = scmp.eq.s32.totalorder %s20, 0
      %p60 = por %p58, %p59
      %p61 = scmp.ne.s32.totalorder %s47, %s48
      %p62 = scmp.eq.s32.totalorder %s21, 3
      %p63 = por %p61, %p62
      %p65 = scmp.ne.s32.totalorder %s48, %s64
      %p66 = scmp.eq.s32.totalorder %s21, 0
      %p67 = por %p65, %p66
      %s68 = ssub.s32 %s23, %s37
      %p69 = scmp.eq.s32.totalorder %s68, 0
      %s71 = sadd.s32 %s70, 1
      %s72 = scalar_select %p69, %s70, %s71
      %p75 = pneg %p69
      %p76 = scmp.eq.s32.totalorder %s15, 3
      %p77 = por %p75, %p76
      %p78 = scmp.ne.s32.totalorder %s70, %s73
      %p79 = scmp.eq.s32.totalorder %s15, 0
      %p80 = por %p78, %p79
      %p81 = scmp.ne.s32.totalorder %s70, %s73
      %p82 = scmp.eq.s32.totalorder %s20, 3
      %p83 = por %p81, %p82
      %p84 = scmp.ne.s32.totalorder %s73, %s74
      %p85 = scmp.eq.s32.totalorder %s20, 0
      %p86 = por %p84, %p85
      %p87 = scmp.ne.s32.totalorder %s73, %s74
      %p88 = scmp.eq.s32.totalorder %s21, 3
      %p89 = por %p87, %p88
      %p91 = scmp.ne.s32.totalorder %s74, %s90
      %p92 = scmp.eq.s32.totalorder %s21, 0
      %p93 = por %p91, %p92
      %s94 = ssub.s32 %s23, %s37
      %p95 = scmp.eq.s32.totalorder %s94, 0
      %s97 = sadd.s32 %s96, 1
      %s98 = scalar_select %p95, %s96, %s97
      %p101 = pneg %p95
      %p102 = scmp.eq.s32.totalorder %s15, 3
      %p103 = por %p101, %p102
      %p104 = scmp.ne.s32.totalorder %s96, %s99
      %p105 = scmp.eq.s32.totalorder %s15, 0
      %p106 = por %p104, %p105
      %p107 = scmp.ne.s32.totalorder %s96, %s99
      %p108 = scmp.eq.s32.totalorder %s20, 3
      %p109 = por %p107, %p108
      %p110 = scmp.ne.s32.totalorder %s99, %s100
      %p111 = scmp.eq.s32.totalorder %s20, 0
      %p112 = por %p110, %p111
      %p113 = scmp.ne.s32.totalorder %s99, %s100
      %p114 = scmp.eq.s32.totalorder %s21, 3
      %p115 = por %p113, %p114
      %p117 = scmp.ne.s32.totalorder %s100, %s116
      %p118 = scmp.eq.s32.totalorder %s21, 0
      %p119 = por %p117, %p118
      %s120 = ssub.s32 %s22, %s41
      %p121 = scmp.eq.s32.totalorder %s120, 0
      %s123 = sadd.s32 %s122, 1
      %s124 = scalar_select %p121, %s122, %s123
      %p127 = pneg %p121
      %p128 = scmp.eq.s32.totalorder %s15, 3
      %p129 = por %p127, %p128
      %p130 = scmp.ne.s32.totalorder %s122, %s125
      %p131 = scmp.eq.s32.totalorder %s15, 0
      %p132 = por %p130, %p131
      %p133 = scmp.ne.s32.totalorder %s122, %s125
      %p134 = scmp.eq.s32.totalorder %s20, 3
      %p135 = por %p133, %p134
      %p136 = scmp.ne.s32.totalorder %s125, %s126
      %p137 = scmp.eq.s32.totalorder %s20, 0
      %p138 = por %p136, %p137
      %p139 = scmp.ne.s32.totalorder %s125, %s126
      %p140 = scmp.eq.s32.totalorder %s21, 3
      %p141 = por %p139, %p140
      %p143 = scmp.ne.s32.totalorder %s126, %s142
      %p144 = scmp.eq.s32.totalorder %s21, 0
      %p145 = por %p143, %p144
      %p146 = scmp.le.s32.totalorder 1, %s15
      %p147 = scmp.lt.s32.totalorder %s15, 5
      %p148 = pnand %p146, %p147
      %p149 = pneg %p148
      // Predicated region
      $region9: #{tpu_custom_call.1} parent=5 // pred_check
        _
      $region10: #{tpu_custom_call.1} parent=5 // pred_check_branch
        %151 = sbr.rel (%p148) target = $region12
      $region11: #{tpu_custom_call.1} parent=5 // pred_region
        %s152 = ssub.s32 %s15, 1
      $region12: #{tpu_custom_call.1} parent=5 // pred_fallthru
        _
      %p153 = scmp.lt.s32.totalorder %s15, 4
      // Predicated region
      $region13: #{tpu_custom_call.1} parent=5 // pred_check
        %p154 = pneg %p153
      $region14: #{tpu_custom_call.1} parent=5 // pred_check_branch
        %156 = sbr.rel (%p154) target = $region16
      $region15: #{tpu_custom_call.1} parent=5 // pred_region
        // Predicated region
        $region17: #{tpu_custom_call.1} parent=15 // pred_check
          %p157 = pneg %p54
        $region18: #{tpu_custom_call.1} parent=15 // pred_check_branch
          %159 = sbr.rel (%p157) target = $region20
        $region19: #{tpu_custom_call.1} parent=15 // pred_region
          %p160 = scmp.lt.s32.totalorder %s22, 1
          %s161 = scalar_select %p160, %s22, 1
          %s162 = smul.addr %s161, 8
          %s163 = scalar_lea.vmem %s0, %s162
        $region20: #{tpu_custom_call.1} parent=15 // pred_fallthru
          _
        // Predicated region
        $region21: #{tpu_custom_call.1} parent=15 // pred_check
          %p164 = pneg %p80
        $region22: #{tpu_custom_call.1} parent=15 // pred_check_branch
          %166 = sbr.rel (%p164) target = $region24
        $region23: #{tpu_custom_call.1} parent=15 // pred_region
          %s167 = sand.u32 %s70, 1
          %s168 = scalar_lea.sflag [#allocation4], %s167
          %s169 = sand.u32 %s70, 1
          %s170 = smul.addr %s169, 8
          %s171 = scalar_lea.vmem [#allocation3], %s170
          %s173 = ssub.s32 128, 128
          %174 = vsyncadd %s168, %s173
          %s175 = smul.addr %s23, 128
          %s176 = scalar_lea.hbm %s1, %s175
          %s178 = sshll.u32 %s171, 4
          %s179 = int_to_ptr.vmem [resolvable:$true] %s178
          %181 = dma.hbm_to_vmem [thread:$0]  %s176, 128, %s179, %s168
        $region24: #{tpu_custom_call.1} parent=15 // pred_fallthru
          _
        // Predicated region
        $region25: #{tpu_custom_call.1} parent=15 // pred_check
          %p182 = pneg %p106
        $region26: #{tpu_custom_call.1} parent=15 // pred_check_branch
          %184 = sbr.rel (%p182) target = $region28
        $region27: #{tpu_custom_call.1} parent=15 // pred_region
          %p185 = scmp.lt.s32.totalorder %s23, 1
          %s186 = scalar_select %p185, %s23, 1
          %s187 = smul.addr %s186, 8
          %s188 = scalar_lea.vmem %s2, %s187
        $region28: #{tpu_custom_call.1} parent=15 // pred_fallthru
          _
      $region16: #{tpu_custom_call.1} parent=5 // pred_fallthru
        _
      %p189 = scmp.le.s32.totalorder 1, %s15
      %p190 = scmp.lt.s32.totalorder %s15, 5
      %p191 = pnand %p189, %p190
      %p192 = pneg %p191
      // Predicated region
      $region29: #{tpu_custom_call.1} parent=5 // pred_check
        _
      $region30: #{tpu_custom_call.1} parent=5 // pred_check_branch
        %194 = sbr.rel (%p191) target = $region32
      $region31: #{tpu_custom_call.1} parent=5 // pred_region
        %s195 = ssub.s32 %s15, 1
        %s196 = sand.u32 %s73, 1
        %s197 = scalar_lea.sflag [#allocation4], %s196
        %s198 = sand.u32 %s73, 1
        %s199 = smul.addr %s198, 8
        %s200 = scalar_lea.vmem [#allocation3], %s199
        // Predicated region
        $region33: #{tpu_custom_call.1} parent=31 // pred_check
          %p201 = pneg %p86
        $region34: #{tpu_custom_call.1} parent=31 // pred_check_branch
          %203 = sbr.rel (%p201) target = $region36
        $region35: #{tpu_custom_call.1} parent=31 // pred_region
          %204 = dma.done %s197, 128
        $region36: #{tpu_custom_call.1} parent=31 // pred_fallthru
          _
        %p205 = scmp.lt.s32.totalorder %s25, 1
        %s206 = scalar_select %p205, %s25, 1
        %s207 = smul.addr %s206, 8
        %s208 = scalar_lea.vmem %s0, %s207
        %p209 = pneg %p60
        %p210 = pneg %p57
        %s211 = sand.u32 %s73, 1
        %s212 = scalar_lea.sflag [#allocation4], %s211
        %s213 = sand.u32 %s73, 1
        %s214 = smul.addr %s213, 8
        %s215 = scalar_lea.vmem [#allocation3], %s214
        %p216 = pneg %p86
        %p217 = pneg %p83
        %p218 = scmp.lt.s32.totalorder %s26, 1
        %s219 = scalar_select %p218, %s26, 1
        %s220 = smul.addr %s219, 8
        %s221 = scalar_lea.vmem %s2, %s220
        %p222 = pneg %p112
        %p223 = pneg %p109
        %p224 = pneg %p138
        %p225 = pneg %p135
        %s226 = sand.u32 %s125, 1
        %s227 = scalar_lea.sflag [#allocation5], %s226
        %s228 = sand.u32 %s125, 1
        %s229 = smul.addr %s228, 8
        %s230 = scalar_lea.vmem [#allocation6], %s229
        %p231 = scmp.lt.s32.totalorder %s25, 1
        %s232 = scalar_select %p231, %s25, 1
        %s233 = smul.addr %s232, 8
        %s234 = scalar_lea.vmem %s0, %s233
        %p235 = scmp.lt.s32.totalorder %s26, 1
        %s236 = scalar_select %p235, %s26, 1
        %s237 = smul.addr %s236, 8
        %s238 = scalar_lea.vmem %s2, %s237
        %v239 = vld [vmem:[%s234] sm:$0xff]
        %vm240 = vcmask 130048
        %241 = vst.msk [vmem:[#allocation2] sm:$0xff] %vm240, %v239
        %243 = vrot.lane.b32.xlu0 %v239, 127
        %v244 = vpop.permute.xlu0 %243
        %246 = vst.msk [vmem:[#allocation2 + $0x8] sm:$0xff] %vm240, %v244
        %247 = vrot.lane.b32.xlu0 %v239, 126
        %v248 = vpop.permute.xlu0 %247
        %250 = vst.msk [vmem:[#allocation2 + $0x10] sm:$0xff] %vm240, %v248
        %251 = vrot.lane.b32.xlu0 %v239, 125
        %v252 = vpop.permute.xlu0 %251
        %254 = vst.msk [vmem:[#allocation2 + $0x18] sm:$0xff] %vm240, %v252
        %255 = vrot.lane.b32.xlu0 %v239, 124
        %v256 = vpop.permute.xlu0 %255
        %258 = vst.msk [vmem:[#allocation2 + $0x20] sm:$0xff] %vm240, %v256
        %v259 = vld [vmem:[%s200] sm:$0xff]
        %v260 = vld [vmem:[#allocation2] sm:$0xff]
        %v261 = vld [vmem:[#allocation2 + $0x8] sm:$0xff]
        %v262 = vld [vmem:[#allocation2 + $0x10] sm:$0xff]
        %v263 = vld [vmem:[#allocation2 + $0x18] sm:$0xff]
        %v264 = vld [vmem:[#allocation2 + $0x20] sm:$0xff]
        %v265 = vld [vmem:[%s238] sm:$0xff]
        %267 = vset.pattern.permute.xlu0 0
        %268 = vperm.xlu0 %267, %v265
        %v269 = vpop.permute.xlu0 %268
        %vm271 = vcmask 326656
        %v273 = vsel %vm271, %v259, 0
        %275 = vmatprep.subr.mxu0 0.0
        %276 = vmatpush1.msra.mxu0 %v260
        %277 = vmatprep.subr.mxu0 0.0
        %278 = vmatpush1.msra.mxu0 %v261
        %279 = vmatprep.subr.mxu0 0.0
        %280 = vmatpush1.msra.mxu0 %v262
        %281 = vmatprep.subr.mxu0 0.0
        %282 = vmatpush1.msra.mxu0 %v263
        %283 = vmatprep.subr.mxu0 0.0
        %284 = vmatpush1.msra.mxu0 %v264
        %285 = vmatprep.subr.mxu0 0.0
        %286 = vmatpush1.msra.mxu0 0.0
        %287 = vmatprep.subr.mxu0 0.0
        %288 = vmatpush1.msra.mxu0 0.0
        %289 = vmatprep.subr.mxu0 0.0
        %290 = vmatpush1.msra.mxu0 0.0
        %291 = vmatprep.subr.mxu0 0.0
        %292 = vmatpush1.msra.mxu0 0.0
        %293 = vmatprep.subr.mxu0 0.0
        %294 = vmatpush1.msra.mxu0 0.0
        %295 = vmatprep.subr.mxu0 0.0
        %296 = vmatpush1.msra.mxu0 0.0
        %297 = vmatprep.subr.mxu0 0.0
        %298 = vmatpush1.msra.mxu0 0.0
        %299 = vmatprep.subr.mxu0 0.0
        %300 = vmatpush1.msra.mxu0 0.0
        %301 = vmatprep.subr.mxu0 0.0
        %302 = vmatpush1.msra.mxu0 0.0
        %303 = vmatprep.subr.mxu0 0.0
        %304 = vmatpush1.msra.mxu0 0.0
        %305 = vmatprep.subr.mxu0 0.0
        %306 = vmatpush1.msra.mxu0 0.0
        %307 = vmatprep.subr.mxu0 0.0
        %308 = vmatpush1.msra.mxu0 0.0
        %309 = vmatprep.subr.mxu0 0.0
        %310 = vmatpush1.msra.mxu0 0.0
        %311 = vmatprep.subr.mxu0 0.0
        %312 = vmatpush1.msra.mxu0 0.0
        %313 = vmatprep.subr.mxu0 0.0
        %314 = vmatpush1.msra.mxu0 0.0
        %315 = vmatprep.subr.mxu0 0.0
        %316 = vmatpush1.msra.mxu0 0.0
        %317 = vmatprep.subr.mxu0 0.0
        %318 = vmatpush1.msra.mxu0 0.0
        %319 = vmatprep.subr.mxu0 0.0
        %320 = vmatpush1.msra.mxu0 0.0
        %321 = vmatprep.subr.mxu0 0.0
        %322 = vmatpush1.msra.mxu0 0.0
        %323 = vmatprep.subr.mxu0 0.0
        %324 = vmatpush1.msra.mxu0 0.0
        %325 = vmatprep.subr.mxu0 0.0
        %326 = vmatpush1.msra.mxu0 0.0
        %327 = vmatprep.subr.mxu0 0.0
        %328 = vmatpush1.msra.mxu0 0.0
        %329 = vmatprep.subr.mxu0 0.0
        %330 = vmatpush1.msra.mxu0 0.0
        %331 = vmatprep.subr.mxu0 0.0
        %332 = vmatpush1.msra.mxu0 0.0
        %333 = vmatprep.subr.mxu0 0.0
        %334 = vmatpush1.msra.mxu0 0.0
        %335 = vmatprep.subr.mxu0 0.0
        %336 = vmatpush1.msra.mxu0 0.0
        %337 = vmatprep.subr.mxu0 0.0
        %338 = vmatpush1.msra.mxu0 0.0
        %339 = vmatprep.mubr.f32.mxu0 0.0
        %340 = vmatmul.mubr.f32.gmra.mrb[0].mxu0 %v273
        %v341 = vpop.f32.mrb[0].mxu0
        %v342 = vadd.f32 %v269, %v341
        %v343 = vpop.f32.mrb[0].mxu0
        %344 = vdwg.mxu0
        %v345 = vmul.f32 %v342, 0.5
        %v346 = vmul.f32 %v342, 0.7978846
        %v347 = vmul.f32 %v342, 0.044715
        %v348 = vmul.f32 %v347, %v342
        %v349 = vadd.f32 %v348, 1.0
        %v350 = vmul.f32 %v346, %v349
        %v351 = vtanh.pop %v350
        %v352 = vadd.f32 %v351, 1.0
        %v353 = vmul.f32 %v345, %v352
        %p354 = scmp.eq.s32.totalorder %s26, 0
        // Predicated region
        $region37: #{tpu_custom_call.1} parent=31 // pred_check
          %p355 = pneg %p354
        $region38: #{tpu_custom_call.1} parent=31 // pred_check_branch
          %357 = sbr.rel (%p355) target = $region40
        $region39: #{tpu_custom_call.1} parent=31 // pred_region
          %358 = vst.msk [vmem:[%s230] sm:$0xff] %vm240, %v353
        $region40: #{tpu_custom_call.1} parent=31 // pred_fallthru
          _
        %p359 = scmp.eq.s32.totalorder %s26, 1
        // Predicated region
        $region41: #{tpu_custom_call.1} parent=31 // pred_check
          %p360 = pneg %p359
        $region42: #{tpu_custom_call.1} parent=31 // pred_check_branch
          %362 = sbr.rel (%p360) target = $region44
        $region43: #{tpu_custom_call.1} parent=31 // pred_region
          %364 = vrot.lane.b32.xlu0 %v353, 16
          %v365 = vpop.permute.xlu0 %364
          %vm367 = vcmask 261248
          %368 = vst.msk [vmem:[%s230] sm:$0xff] %vm367, %v365
        $region44: #{tpu_custom_call.1} parent=31 // pred_fallthru
          _
        %s369 = sand.u32 %s125, 1
        %s370 = scalar_lea.sflag [#allocation5], %s369
        %s371 = sand.u32 %s125, 1
        %s372 = smul.addr %s371, 8
        %s373 = scalar_lea.vmem [#allocation6], %s372
        // Predicated region
        $region45: #{tpu_custom_call.1} parent=31 // pred_check
          %p374 = pneg %p135
        $region46: #{tpu_custom_call.1} parent=31 // pred_check_branch
          %376 = sbr.rel (%p374) target = $region48
        $region47: #{tpu_custom_call.1} parent=31 // pred_region
          %s378 = ssub.s32 128, 128
          %379 = vsyncadd %s370, %s378
          %s380 = smul.addr %s25, 128
          %s381 = scalar_lea.hbm %s3, %s380
          %s383 = sshll.u32 %s373, 4
          %s384 = int_to_ptr.vmem [resolvable:$true] %s383
          %386 = dma.vmem_to_hbm [thread:$0]  %s384, 128, %s381, %s370
        $region48: #{tpu_custom_call.1} parent=31 // pred_fallthru
          _
      $region32: #{tpu_custom_call.1} parent=5 // pred_fallthru
        _
      %p387 = scmp.le.s32.totalorder 2, %s15
      // Predicated region
      $region49: #{tpu_custom_call.1} parent=5 // pred_check
        %p388 = pneg %p387
      $region50: #{tpu_custom_call.1} parent=5 // pred_check_branch
        %390 = sbr.rel (%p388) target = $region52
      $region51: #{tpu_custom_call.1} parent=5 // pred_region
        %s391 = ssub.s32 %s15, 2
        // Predicated region
        $region53: #{tpu_custom_call.1} parent=51 // pred_check
          %p392 = pneg %p141
        $region54: #{tpu_custom_call.1} parent=51 // pred_check_branch
          %394 = sbr.rel (%p392) target = $region56
        $region55: #{tpu_custom_call.1} parent=51 // pred_region
          %s395 = sand.u32 %s126, 1
          %s396 = scalar_lea.sflag [#allocation5], %s395
          %s397 = sand.u32 %s126, 1
          %s398 = smul.addr %s397, 8
          %s399 = scalar_lea.vmem [#allocation6], %s398
          %400 = dma.done %s396, 128
        $region56: #{tpu_custom_call.1} parent=51 // pred_fallthru
          _
      $region52: #{tpu_custom_call.1} parent=5 // pred_fallthru
        _
    $region6: #{tpu_custom_call.1} parent=1 // loop_footer
      %s19 = sadd.s32 1, %s15
    $region7: #{tpu_custom_call.1} parent=1 // loop_footer_branch
      %14 = sbr.rel target = $region3
    $region8: #{tpu_custom_call.1} parent=1 // loop_exit
      _
    %401 = vsyncpa [#allocation4], 1
    %s402 = scalar_lea.sflag [#allocation4], 1
    %403 = vsyncpa %s402, 1
    %404 = vsyncpa [#allocation5], 1
    %s405 = scalar_lea.sflag [#allocation5], 1
    %406 = vsyncpa %s405, 1

</llo_original>
